<compile_context>
chip_gen: v7x
topology: tpu7x:2x2x1
jax: 0.10.0
libtpu: 0.0.40
codegen_flags: <defaults>
</compile_context>

<pallas_src>
import jax
import jax.numpy as jnp
from jax.experimental import pallas as pl
from jax.experimental.pallas import tpu as pltpu  # noqa: F401  (TPU backend)

LANE = 128  # TPU lane width; pad the output feature axis to a multiple of this.


def concat_linear_kernel(t_ref, x_ref, w_ref, b_ref, wh_ref, o_ref):
    # Single MXU pass: [B, Din] @ [Din, Dout_pad], f32 accumulation.
    y = jnp.dot(x_ref[...], w_ref[...], preferred_element_type=jnp.float32)
    # Hyper-bias Linear(1, Dout, bias=False) == rank-1 outer product t ⊗ w_hyper:
    # computed as a broadcast multiply on the VPU, fused with the bias add.
    o_ref[...] = (y + t_ref[...] * wh_ref[...] + b_ref[...]).astype(o_ref.dtype)


def concat_linear_v2(t, x, w, b, w_hyper):
    """out = x @ w + b + t[:, None] * w_hyper.

    Args:
      t:       [B]           per-sample scalar time.
      x:       [B, dim_in]   input features.
      w:       [dim_in, dim_out]  main Linear weight (already transposed vs torch).
      b:       [dim_out]     main Linear bias.
      w_hyper: [dim_out]     hyper-bias Linear(1, dim_out, bias=False) weight, flattened.
    Returns:
      [B, dim_out] float32.
    """
    B, dim_in = x.shape
    dim_out = w.shape[1]

    # Pad the output feature axis to a multiple of 128 so the kernel's only
    # store is an unmasked, lane-dense vst.  Zero padding keeps math exact.
    d_pad = pl.cdiv(dim_out, LANE) * LANE
    pad = d_pad - dim_out
    if pad:
        w = jnp.pad(w, ((0, 0), (0, pad)))
        b = jnp.pad(b, ((0, pad),))
        w_hyper = jnp.pad(w_hyper, ((0, pad),))

    t2 = t.reshape(B, 1)
    b2 = b.reshape(1, d_pad)
    wh2 = w_hyper.reshape(1, d_pad)

    # Tiny problem: one grid point, every operand is a single full VMEM block.
    full = lambda shape: pl.BlockSpec(shape, lambda: (0,) * len(shape))
    out = pl.pallas_call(
        concat_linear_kernel,
        out_shape=jax.ShapeDtypeStruct((B, d_pad), jnp.float32),
        grid=(),
        in_specs=[
            full((B, 1)),           # t
            full((B, dim_in)),      # x
            full((dim_in, d_pad)),  # w (transposed, padded)
            full((1, d_pad)),       # b
            full((1, d_pad)),       # w_hyper
        ],
        out_specs=full((B, d_pad)),
    )(t2, x, w, b2, wh2)

    return out[:, :dim_out] if pad else out


def reference(t, x, w, b, w_hyper):
    return x @ w + b + t[:, None] * w_hyper


if __name__ == "__main__":
    B, dim_in, dim_out = 8, 16, 32

    key = jax.random.PRNGKey(0)
    k_t, k_x, k_w, k_b, k_wh = jax.random.split(key, 5)

    # Deterministic synthetic parameters (nn.Linear-style uniform init).
    bound_main = 1.0 / (dim_in ** 0.5)   # nn.Linear(dim_in, dim_out)
    bound_hyper = 1.0                    # nn.Linear(1, dim_out): 1/sqrt(1)

    t = jax.random.uniform(k_t, (B,), dtype=jnp.float32)
    x = jax.random.normal(k_x, (B, dim_in), dtype=jnp.float32)
    w = jax.random.uniform(k_w, (dim_in, dim_out), dtype=jnp.float32,
                           minval=-bound_main, maxval=bound_main)
    b = jax.random.uniform(k_b, (dim_out,), dtype=jnp.float32,
                           minval=-bound_main, maxval=bound_main)
    w_hyper = jax.random.uniform(k_wh, (dim_out,), dtype=jnp.float32,
                                 minval=-bound_hyper, maxval=bound_hyper)

    out = concat_linear_v2(t, x, w, b, w_hyper)
    out = jax.block_until_ready(out)

    ref = reference(t, x, w, b, w_hyper)
    assert out.shape == (B, dim_out)
    assert jnp.allclose(out, ref, atol=1e-5, rtol=1e-5)
    print("KERNEL_OK")
</pallas_src>

<mosaic_0001>
module attributes {stable_mosaic.version = 11 : i64} {
  func.func @concat_linear_kernel(%arg0: memref<8x1xf32, #tpu.memory_space<vmem>>, %arg1: memref<8x16xf32, #tpu.memory_space<vmem>>, %arg2: memref<16x128xf32, #tpu.memory_space<vmem>>, %arg3: memref<1x128xf32, #tpu.memory_space<vmem>>, %arg4: memref<1x128xf32, #tpu.memory_space<vmem>>, %arg5: memref<8x128xf32, #tpu.memory_space<vmem>>) attributes {dimension_semantics = [], scalar_prefetch = 0 : i64, scratch_operands = 0 : i64, tpu.core_type = #tpu.core_type<tc>} {
    %c0 = arith.constant 0 : index
    %c0_0 = arith.constant 0 : index
    %0 = vector.load %arg1[%c0, %c0_0] : memref<8x16xf32, #tpu.memory_space<vmem>>, vector<8x16xf32>
    %c0_1 = arith.constant 0 : index
    %c0_2 = arith.constant 0 : index
    %1 = vector.load %arg2[%c0_1, %c0_2] : memref<16x128xf32, #tpu.memory_space<vmem>>, vector<16x128xf32>
    %cst = arith.constant dense<0.000000e+00> : vector<8x128xf32>
    %2 = tpu.matmul %0, %1, %cst {dimension_numbers = #tpu.dot_dimension_numbers<[1], [0], [0], [1], [0, 0, 1, 1], [], []>} : vector<8x16xf32>, vector<16x128xf32>, vector<8x128xf32> -> vector<8x128xf32>
    %c0_3 = arith.constant 0 : index
    %c0_4 = arith.constant 0 : index
    %3 = vector.load %arg0[%c0_3, %c0_4] : memref<8x1xf32, #tpu.memory_space<vmem>>, vector<8x1xf32>
    %c0_5 = arith.constant 0 : index
    %c0_6 = arith.constant 0 : index
    %4 = vector.load %arg4[%c0_5, %c0_6] : memref<1x128xf32, #tpu.memory_space<vmem>>, vector<1x128xf32>
    %5 = vector.broadcast %3 : vector<8x1xf32> to vector<8x128xf32>
    %6 = vector.broadcast %4 : vector<1x128xf32> to vector<8x128xf32>
    %7 = arith.mulf %5, %6 : vector<8x128xf32>
    %8 = arith.addf %2, %7 : vector<8x128xf32>
    %c0_7 = arith.constant 0 : index
    %c0_8 = arith.constant 0 : index
    %9 = vector.load %arg3[%c0_7, %c0_8] : memref<1x128xf32, #tpu.memory_space<vmem>>, vector<1x128xf32>
    %10 = vector.broadcast %9 : vector<1x128xf32> to vector<8x128xf32>
    %11 = arith.addf %8, %10 : vector<8x128xf32>
    %c0_9 = arith.constant 0 : index
    %c0_10 = arith.constant 0 : index
    %12 = vector.load %arg5[%c0_9, %c0_10] : memref<8x128xf32, #tpu.memory_space<vmem>>, vector<8x128xf32>
    tpu.vector_store %arg5[%c0_9, %c0_10], %11 {strides = array<i32>} : memref<8x128xf32, #tpu.memory_space<vmem>>, vector<8x128xf32>,
    return
  }
}

</mosaic_0001>

<llo_original>
// kernel: tpu_custom_call.1
$region0: #{tpu_custom_call.1}
  #allocation0 [shape = 'u32[]', space=smem, size = 0x4, offset = 0x4, fixed_abs, tag = 'smem constant byte address 0x4 - core index']
  #allocation1 [shape = 'u32[144,128]{1,0:T(1,128)}', space=vmem, size = 0x12000, scoped, tag = 'internal scratch']
  %s0 = inlined_call_operand.vmem [shape: f32[8,1], index: 0, kind: input, shape index: {}]
  %s1 = inlined_call_operand.hbm [shape: f32[8,16], index: 1, kind: input, shape index: {}]
  %s2 = inlined_call_operand.vmem [shape: f32[16,128], index: 2, kind: input, shape index: {}]
  %s3 = inlined_call_operand.vmem [shape: f32[1,128], index: 3, kind: input, shape index: {}]
  %s4 = inlined_call_operand.vmem [shape: f32[1,128], index: 4, kind: input, shape index: {}]
  %s5 = inlined_call_operand.hbm [shape: f32[8,128], index: 5, kind: output, shape index: {}]
  %s6 = sld [smem:[#allocation0]]
  $region34: #{tpu_custom_call.1} parent=0
    _
  %s8 = ssub.s32 1, %s6
  %s9 = scalar_select 0, %s8, %s6
  $region1: #{tpu_custom_call.1} parent=0
    #allocation2 [shape = 'u8[4096]{0}', space=vmem, size = 0x1000, scoped, tag = 'input window, operand 1, single buffered']
    #allocation3 [shape = 's32[1]{0}', space=sflag, size = 0x4, scoped, tag = 'scoped memory for tpu_custom_call.1']
    #allocation4 [shape = 's32[1]{0}', space=sflag, size = 0x4, scoped, tag = 'scoped memory for tpu_custom_call.1']
    #allocation5 [shape = 'u8[4096]{0}', space=vmem, size = 0x1000, scoped, tag = 'output window, operand 0, single buffered']
    %10 = vsyncpa [#allocation3], 0
    %11 = vsyncpa [#allocation4], 0
    // Predicated region
    $region2: #{tpu_custom_call.1} parent=1 // pred_check
      _
    $region3: #{tpu_custom_call.1} parent=1 // pred_check_branch
      %13 = sbr.rel (0) target = $region5
    $region4: #{tpu_custom_call.1} parent=1 // pred_region
      _
    $region5: #{tpu_custom_call.1} parent=1 // pred_fallthru
      _
    // Predicated region
    $region6: #{tpu_custom_call.1} parent=1 // pred_check
      _
    $region7: #{tpu_custom_call.1} parent=1 // pred_check_branch
      %15 = sbr.rel (0) target = $region9
    $region8: #{tpu_custom_call.1} parent=1 // pred_region
      %s17 = ssub.s32 128, 128
      %18 = vsyncadd [#allocation3], %s17
      %s20 = sshll.u32 [#allocation2], 4
      %s21 = int_to_ptr.vmem [resolvable:$true] %s20
      %23 = dma.hbm_to_vmem [thread:$0]  %s1, 128, %s21, [#allocation3]
    $region9: #{tpu_custom_call.1} parent=1 // pred_fallthru
      _
    // Predicated region
    $region10: #{tpu_custom_call.1} parent=1 // pred_check
      _
    $region11: #{tpu_custom_call.1} parent=1 // pred_check_branch
      %25 = sbr.rel (0) target = $region13
    $region12: #{tpu_custom_call.1} parent=1 // pred_region
      _
    $region13: #{tpu_custom_call.1} parent=1 // pred_fallthru
      _
    // Predicated region
    $region14: #{tpu_custom_call.1} parent=1 // pred_check
      _
    $region15: #{tpu_custom_call.1} parent=1 // pred_check_branch
      %27 = sbr.rel (0) target = $region17
    $region16: #{tpu_custom_call.1} parent=1 // pred_region
      _
    $region17: #{tpu_custom_call.1} parent=1 // pred_fallthru
      _
    // Predicated region
    $region18: #{tpu_custom_call.1} parent=1 // pred_check
      _
    $region19: #{tpu_custom_call.1} parent=1 // pred_check_branch
      %29 = sbr.rel (0) target = $region21
    $region20: #{tpu_custom_call.1} parent=1 // pred_region
      _
    $region21: #{tpu_custom_call.1} parent=1 // pred_fallthru
      _
    // Predicated region
    $region22: #{tpu_custom_call.1} parent=1 // pred_check
      _
    $region23: #{tpu_custom_call.1} parent=1 // pred_check_branch
      %31 = sbr.rel (0) target = $region25
    $region24: #{tpu_custom_call.1} parent=1 // pred_region
      %32 = dma.done [#allocation3], 128
    $region25: #{tpu_custom_call.1} parent=1 // pred_fallthru
      _
    %v33 = vld [vmem:[#allocation2] sm:$0xff]
    %v34 = vld [vmem:[%s2] sm:$0xff]
    %v35 = vld [vmem:[%s2 + $0x8] sm:$0xff]
    %v36 = vld [vmem:[%s0] sm:$0xff]
    %v37 = vld [vmem:[%s4] sm:$0x1]
    %39 = vset.pattern.permute.xlu0 0
    %40 = vperm.xlu0 %39, %v36
    %v41 = vpop.permute.xlu0 %40
    %v44 = vlaneseq
    %v45 = vshrl.u32 %v44, 7
    %v46 = vsub.s32 0, %v45
    %v47 = vrot.slane %v37, %v46
    %v49 = vmul.f32 %v41, %v47
    %vm50 = vcmask 130048
    %v52 = vsel %vm50, %v33, 0
    %54 = vmatprep.subr.mxu0 0.0
    %55 = vmatpush1.msra.mxu0 %v34
    %56 = vmatprep.subr.mxu0 0.0
    %57 = vmatpush1.msra.mxu0 %v35
    %58 = vmatprep.subr.mxu0 0.0
    %59 = vmatpush1.msra.mxu0 0.0
    %60 = vmatprep.subr.mxu0 0.0
    %61 = vmatpush1.msra.mxu0 0.0
    %62 = vmatprep.subr.mxu0 0.0
    %63 = vmatpush1.msra.mxu0 0.0
    %64 = vmatprep.subr.mxu0 0.0
    %65 = vmatpush1.msra.mxu0 0.0
    %66 = vmatprep.subr.mxu0 0.0
    %67 = vmatpush1.msra.mxu0 0.0
    %68 = vmatprep.subr.mxu0 0.0
    %69 = vmatpush1.msra.mxu0 0.0
    %70 = vmatprep.subr.mxu0 0.0
    %71 = vmatpush1.msra.mxu0 0.0
    %72 = vmatprep.subr.mxu0 0.0
    %73 = vmatpush1.msra.mxu0 0.0
    %74 = vmatprep.subr.mxu0 0.0
    %75 = vmatpush1.msra.mxu0 0.0
    %76 = vmatprep.subr.mxu0 0.0
    %77 = vmatpush1.msra.mxu0 0.0
    %78 = vmatprep.subr.mxu0 0.0
    %79 = vmatpush1.msra.mxu0 0.0
    %80 = vmatprep.subr.mxu0 0.0
    %81 = vmatpush1.msra.mxu0 0.0
    %82 = vmatprep.subr.mxu0 0.0
    %83 = vmatpush1.msra.mxu0 0.0
    %84 = vmatprep.subr.mxu0 0.0
    %85 = vmatpush1.msra.mxu0 0.0
    %86 = vmatprep.subr.mxu0 0.0
    %87 = vmatpush1.msra.mxu0 0.0
    %88 = vmatprep.subr.mxu0 0.0
    %89 = vmatpush1.msra.mxu0 0.0
    %90 = vmatprep.subr.mxu0 0.0
    %91 = vmatpush1.msra.mxu0 0.0
    %92 = vmatprep.subr.mxu0 0.0
    %93 = vmatpush1.msra.mxu0 0.0
    %94 = vmatprep.subr.mxu0 0.0
    %95 = vmatpush1.msra.mxu0 0.0
    %96 = vmatprep.subr.mxu0 0.0
    %97 = vmatpush1.msra.mxu0 0.0
    %98 = vmatprep.subr.mxu0 0.0
    %99 = vmatpush1.msra.mxu0 0.0
    %100 = vmatprep.subr.mxu0 0.0
    %101 = vmatpush1.msra.mxu0 0.0
    %102 = vmatprep.subr.mxu0 0.0
    %103 = vmatpush1.msra.mxu0 0.0
    %104 = vmatprep.subr.mxu0 0.0
    %105 = vmatpush1.msra.mxu0 0.0
    %106 = vmatprep.subr.mxu0 0.0
    %107 = vmatpush1.msra.mxu0 0.0
    %108 = vmatprep.subr.mxu0 0.0
    %109 = vmatpush1.msra.mxu0 0.0
    %110 = vmatprep.subr.mxu0 0.0
    %111 = vmatpush1.msra.mxu0 0.0
    %112 = vmatprep.subr.mxu0 0.0
    %113 = vmatpush1.msra.mxu0 0.0
    %114 = vmatprep.subr.mxu0 0.0
    %115 = vmatpush1.msra.mxu0 0.0
    %116 = vmatprep.subr.mxu0 0.0
    %117 = vmatpush1.msra.mxu0 0.0
    %118 = vmatprep.mubr.f32.mxu0 0.0
    %119 = vmatmul.mubr.f32.gmra.mrb[0].mxu0 %v52
    %v120 = vpop.f32.mrb[0].mxu0
    %v121 = vadd.f32 %v49, %v120
    %v122 = vpop.f32.mrb[0].mxu0
    %123 = vdwg.mxu0
    %v124 = vld [vmem:[%s3] sm:$0x1]
    %v126 = vlaneseq
    %v127 = vshrl.u32 %v126, 7
    %v128 = vsub.s32 0, %v127
    %v129 = vrot.slane %v124, %v128
    %v131 = vadd.f32 %v121, %v129
    %132 = vst [vmem:[#allocation5] sm:$0xff] %v131
    // Predicated region
    $region26: #{tpu_custom_call.1} parent=1 // pred_check
      _
    $region27: #{tpu_custom_call.1} parent=1 // pred_check_branch
      %134 = sbr.rel (0) target = $region29
    $region28: #{tpu_custom_call.1} parent=1 // pred_region
      %s136 = ssub.s32 128, 128
      %137 = vsyncadd [#allocation4], %s136
      %s139 = sshll.u32 [#allocation5], 4
      %s140 = int_to_ptr.vmem [resolvable:$true] %s139
      %142 = dma.vmem_to_hbm [thread:$0]  %s140, 128, %s5, [#allocation4]
    $region29: #{tpu_custom_call.1} parent=1 // pred_fallthru
      _
    // Predicated region
    $region30: #{tpu_custom_call.1} parent=1 // pred_check
      _
    $region31: #{tpu_custom_call.1} parent=1 // pred_check_branch
      %144 = sbr.rel (0) target = $region33
    $region32: #{tpu_custom_call.1} parent=1 // pred_region
      %145 = dma.done [#allocation4], 128
    $region33: #{tpu_custom_call.1} parent=1 // pred_fallthru
      _
    %146 = vsyncpa [#allocation3], 1
    %147 = vsyncpa [#allocation4], 1

</llo_original>
